<compile_context>
chip_gen: v6e
topology: v6e:2x2x1
jax: 0.10.0
libtpu: 0.0.40
codegen_flags: <defaults>
</compile_context>

<pallas_src>
import jax
import jax.numpy as jnp
from jax.experimental import pallas as pl
from jax.experimental.pallas import tpu as pltpu

# ---------------------------------------------------------------------------
# Problem sizes (small, synthetic).  obs_dim == hidden so that the
# action_head(raw x) call in the original code is shape-valid.
# ---------------------------------------------------------------------------
BATCH = 8
OBS_DIM = 32
HIDDEN = 32
ACTION_DIM = 8
LANES = 128                     # lane-dense width for padded weights & output

# Packed output lane layout: [ v | a (8) | act (8) | zero pad ... ]
V_OFF = 0
A_OFF = 1
ACT_OFF = 1 + ACTION_DIM
PACK_W = 1 + 2 * ACTION_DIM

assert OBS_DIM == HIDDEN, "action_head(raw x) requires obs_dim == hidden"


# ---------------------------------------------------------------------------
# Pallas kernel: one (net, batch-tile) grid step of the forward hot path.
# All weights/biases are host-padded to 128 lanes at their target lane
# offsets, so every op below is an unmasked full-lane vreg op and the packed
# output needs no concat / roll / select.
# ---------------------------------------------------------------------------
def _shared_model_kernel(net_ids_ref, x_ref, w1_ref, w2_ref, wh_ref, wah_ref,
                         b_ref, out_ref):
    del net_ids_ref  # only used by the index_maps (scalar prefetch)
    x = x_ref[...]                                                # [TB, OBS]

    # features: two Linear->Tanh layers (lanes >= HIDDEN stay exactly zero).
    f1 = jnp.tanh(
        jnp.dot(x, w1_ref[...], preferred_element_type=jnp.float32)
        + b_ref[0:1, :])
    f2 = jnp.tanh(
        jnp.dot(f1, w2_ref[...], preferred_element_type=jnp.float32)
        + b_ref[1:2, :])

    # Dueling head [v | a] lands at lanes 0..8; action head (on RAW x) lands
    # at lanes 9..16; everything else is zero by construction of the padded
    # weights, so the packed output is a plain sum.
    head = jnp.dot(f2, wh_ref[...], preferred_element_type=jnp.float32)
    act = jnp.dot(x, wah_ref[...], preferred_element_type=jnp.float32)
    out_ref[...] = head + act + b_ref[2:3, :]


def _pick_tile_b(batch):
    # Largest batch tile <= 512 rows that divides the batch and is a multiple
    # of 8 sublanes (or the whole batch when it is small).  Sized so the
    # double-buffered (TILE_B x 128) f32 in/out tiles stay far under v7x's
    # 64 MiB physical / 32 MiB scoped VMEM; weights (~320 KiB) are resident.
    if batch <= 512:
        return batch
    for t in (512, 256, 128, 64, 32, 16, 8):
        if batch % t == 0:
            return t
    return batch


def _forward_pallas(traces, stacked_params, net_ids):
    """Run forward for the nets selected by `net_ids` in ONE pallas_call.

    Returns (v, a, q, action_logits) each with a leading `len(net_ids)` axis.
    """
    w1_s, w2_s, wh_s, wah_s, b_s = stacked_params
    x = traces if traces.dtype == jnp.float32 else traces.astype(jnp.float32)
    batch = x.shape[0]
    tile_b = _pick_tile_b(batch)
    n_sel = int(net_ids.shape[0])
    grid = (n_sel, batch // tile_b)

    # Constant-per-net index_map: weights DMA'd once, resident across every
    # batch-tile step of the inner grid axis.
    w_map = lambda n, b, ids: (ids[n], 0, 0)

    packed = pl.pallas_call(
        _shared_model_kernel,
        out_shape=jax.ShapeDtypeStruct((n_sel, batch, LANES), jnp.float32),
        grid_spec=pltpu.PrefetchScalarGridSpec(
            num_scalar_prefetch=1,
            grid=grid,
            in_specs=[
                pl.BlockSpec((tile_b, OBS_DIM), lambda n, b, ids: (b, 0)),
                pl.BlockSpec((None, OBS_DIM, LANES), w_map),   # W1   padded
                pl.BlockSpec((None, LANES, LANES), w_map),     # W2   padded
                pl.BlockSpec((None, LANES, LANES), w_map),     # [Wv|Wa] padded
                pl.BlockSpec((None, OBS_DIM, LANES), w_map),   # Wah  padded
                pl.BlockSpec((None, 3, LANES), w_map),         # bias slab
            ],
            out_specs=pl.BlockSpec((None, tile_b, LANES),
                                   lambda n, b, ids: (n, b, 0)),
        ),
        compiler_params=pltpu.CompilerParams(
            dimension_semantics=("parallel", "parallel")),
    )(net_ids, x, w1_s, w2_s, wh_s, wah_s, b_s)

    # Unpack the lane-dense slab outside the kernel (cheap XLA slices).
    v = packed[:, :, V_OFF:V_OFF + 1]
    a = packed[:, :, A_OFF:A_OFF + ACTION_DIM]
    act = packed[:, :, ACT_OFF:ACT_OFF + ACTION_DIM]
    # q = v + a - a.mean(): torch's GLOBAL per-forward mean, computed here so
    # the kernel's batch tiling can never change the mean's scope.
    q = v + a - jnp.mean(a, axis=(1, 2), keepdims=True)
    return v, a, q, act


# ---------------------------------------------------------------------------
# Parameter construction (deterministic torch.nn.Linear-style uniform init)
# followed by host-side padding/fusion into the kernel's 128-lane layout.
# ---------------------------------------------------------------------------
def _linear_params(key, in_dim, out_dim):
    kw, kb = jax.random.split(key)
    bound = 1.0 / jnp.sqrt(jnp.float32(in_dim))
    w = jax.random.uniform(kw, (in_dim, out_dim), jnp.float32, -bound, bound)
    b = jax.random.uniform(kb, (1, out_dim), jnp.float32, -bound, bound)
    return w, b


def make_feature_shared_raw_params(key):
    keys = jax.random.split(key, 5)
    w1, b1 = _linear_params(keys[0], OBS_DIM, HIDDEN)        # feature layer 1
    w2, b2 = _linear_params(keys[1], HIDDEN, HIDDEN)         # feature layer 2
    wv, bv = _linear_params(keys[2], HIDDEN, 1)              # dueling V
    wa, ba = _linear_params(keys[3], HIDDEN, ACTION_DIM)     # dueling A
    wah, bah = _linear_params(keys[4], HIDDEN, ACTION_DIM)   # action head
    return (w1, b1, w2, b2, wv, bv, wa, ba, wah, bah)


def pack_params(raw):
    """Pad weights/biases to 128 lanes at their target lane offsets."""
    w1, b1, w2, b2, wv, bv, wa, ba, wah, bah = raw

    def place(w, col_off, rows):
        out = jnp.zeros((rows, LANES), jnp.float32)
        return out.at[:w.shape[0], col_off:col_off + w.shape[1]].set(w)

    w1_p = place(w1, 0, OBS_DIM)                              # f1 at lanes 0..H-1
    w2_p = place(w2, 0, LANES)                                # f2 at lanes 0..H-1
    wh_p = place(jnp.concatenate([wv, wa], axis=1), V_OFF, LANES)   # [v|a] lanes 0..8
    wah_p = place(wah, ACT_OFF, OBS_DIM)                      # act at lanes 9..16
    b_all = jnp.concatenate(
        [
            place(b1, 0, 1),
            place(b2, 0, 1),
            place(jnp.concatenate([bv, ba, bah], axis=1), V_OFF, 1),
        ],
        axis=0,
    )                                                         # [3, 128]
    # TODO(synk): at realistic batch sizes cast the padded weights to bf16
    # (keep f32 accumulate via preferred_element_type) to halve weight DMA
    # bytes on v6e/v7x; negligible at these toy shapes.
    return (w1_p, w2_p, wh_p, wah_p, b_all)


def stack_params(net_packed, target_packed):
    """Stack net (index 0) and target_net (index 1) params along a new axis."""
    return tuple(jnp.stack([n, t]) for n, t in zip(net_packed, target_packed))


# ---------------------------------------------------------------------------
# CombinedSharedModel wrappers
# ---------------------------------------------------------------------------
def combined_shared_model_forward(traces, stacked_params, *,
                                  action_only=False, target_val=False):
    """Module-faithful forward: pick one net (net=0, target_net=1)."""
    net_ids = jnp.array([1 if target_val else 0], jnp.int32)
    v, a, q, act = _forward_pallas(traces, stacked_params, net_ids)
    # FeatureSharedModel returns (value_head_out, action_head_out);
    # CombinedSharedModel unpacks as `a, v = net(traces)`.
    a_ret = (v[0], a[0], q[0])      # DuelingHead tuple
    v_ret = act[0]                  # action head on raw input
    return a_ret if action_only else (a_ret, v_ret)


def combined_shared_model_forward_both(traces, stacked_params):
    """Run net AND target_net in ONE pallas_call (size-2 net grid axis)."""
    net_ids = jnp.array([0, 1], jnp.int32)
    v, a, q, act = _forward_pallas(traces, stacked_params, net_ids)
    net_out = ((v[0], a[0], q[0]), act[0])
    tgt_out = ((v[1], a[1], q[1]), act[1])
    return net_out, tgt_out


# ---------------------------------------------------------------------------
# Pure-JAX reference of the original module (for correctness cross-check).
# ---------------------------------------------------------------------------
def _ref_forward(x, raw):
    w1, b1, w2, b2, wv, bv, wa, ba, wah, bah = raw
    f1 = jnp.tanh(x @ w1 + b1)
    f2 = jnp.tanh(f1 @ w2 + b2)
    vv = f2 @ wv + bv
    aa = f2 @ wa + ba
    qq = vv + aa - jnp.mean(aa)
    return vv, aa, qq, x @ wah + bah


if __name__ == "__main__":
    root = jax.random.PRNGKey(0)
    k_x, k_net, k_target = jax.random.split(root, 3)

    traces = jax.random.normal(k_x, (BATCH, OBS_DIM), jnp.float32)
    raw_net = make_feature_shared_raw_params(k_net)
    raw_tgt = make_feature_shared_raw_params(k_target)
    stacked = stack_params(pack_params(raw_net), pack_params(raw_tgt))

    # Module-faithful single-net paths (one pallas_call each).
    (v, a, q), action_logits = combined_shared_model_forward(
        traces, stacked, action_only=False, target_val=False)
    jax.block_until_ready((v, a, q, action_logits))

    v_t, a_t, q_t = combined_shared_model_forward(
        traces, stacked, action_only=True, target_val=True)
    jax.block_until_ready((v_t, a_t, q_t))

    # Fused path: net + target_net in a single pallas_call (halves launch
    # overhead whenever both forward passes are needed together).
    ((v_b, a_b, q_b), act_b), ((v_tb, a_tb, q_tb), act_tb) = (
        combined_shared_model_forward_both(traces, stacked))
    jax.block_until_ready((v_b, a_b, q_b, act_b, v_tb, a_tb, q_tb, act_tb))

    assert v.shape == (BATCH, 1)
    assert a.shape == (BATCH, ACTION_DIM)
    assert q.shape == (BATCH, ACTION_DIM)
    assert action_logits.shape == (BATCH, ACTION_DIM)

    # Cross-check both nets against the pure-JAX reference.
    rv, ra, rq, ract = _ref_forward(traces, raw_net)
    rv_t, ra_t, rq_t, ract_t = _ref_forward(traces, raw_tgt)
    tol = dict(atol=5e-5, rtol=5e-5)
    assert jnp.allclose(v, rv, **tol)
    assert jnp.allclose(a, ra, **tol)
    assert jnp.allclose(q, rq, **tol)
    assert jnp.allclose(action_logits, ract, **tol)
    assert jnp.allclose(v_t, rv_t, **tol)
    assert jnp.allclose(a_t, ra_t, **tol)
    assert jnp.allclose(q_t, rq_t, **tol)
    # Fused both-net call must match the single-net calls exactly.
    assert jnp.allclose(v_b, v, **tol) and jnp.allclose(q_b, q, **tol)
    assert jnp.allclose(act_b, action_logits, **tol)
    assert jnp.allclose(v_tb, v_t, **tol) and jnp.allclose(q_tb, q_t, **tol)
    assert jnp.allclose(act_tb, ract_t, **tol)

    print("KERNEL_OK")
</pallas_src>

<mosaic_0001>
module attributes {stable_mosaic.version = 11 : i64} {
  func.func @_shared_model_kernel(%arg0: i32, %arg1: i32, %arg2: memref<1xi32, #tpu.memory_space<smem>>, %arg3: memref<8x32xf32, #tpu.memory_space<vmem>>, %arg4: memref<1x32x128xf32, #tpu.memory_space<vmem>>, %arg5: memref<1x128x128xf32, #tpu.memory_space<vmem>>, %arg6: memref<1x128x128xf32, #tpu.memory_space<vmem>>, %arg7: memref<1x32x128xf32, #tpu.memory_space<vmem>>, %arg8: memref<1x3x128xf32, #tpu.memory_space<vmem>>, %arg9: memref<1x8x128xf32, #tpu.memory_space<vmem>>) attributes {dimension_semantics = [#tpu.dimension_semantics<parallel>, #tpu.dimension_semantics<parallel>], iteration_bounds = array<i64: 1, 1>, scalar_prefetch = 1 : i64, scratch_operands = 0 : i64, tpu.core_type = #tpu.core_type<tc>, window_params = [{transform_indices = @transform_0, window_bounds = array<i64: 8, 32>}, {transform_indices = @transform_1, window_bounds = array<i64: 1, 32, 128>}, {transform_indices = @transform_2, window_bounds = array<i64: 1, 128, 128>}, {transform_indices = @transform_3, window_bounds = array<i64: 1, 128, 128>}, {transform_indices = @transform_4, window_bounds = array<i64: 1, 32, 128>}, {transform_indices = @transform_5, window_bounds = array<i64: 1, 3, 128>}, {transform_indices = @transform_6, window_bounds = array<i64: 1, 8, 128>}]} {
    %c0 = arith.constant 0 : index
    %c0_0 = arith.constant 0 : index
    %0 = vector.load %arg3[%c0, %c0_0] : memref<8x32xf32, #tpu.memory_space<vmem>>, vector<8x32xf32>
    %c0_1 = arith.constant 0 : index
    %c0_2 = arith.constant 0 : index
    %c0_3 = arith.constant 0 : index
    %1 = vector.load %arg4[%c0_1, %c0_2, %c0_3] : memref<1x32x128xf32, #tpu.memory_space<vmem>>, vector<1x32x128xf32>
    %2 = vector.shape_cast %1 : vector<1x32x128xf32> to vector<32x128xf32>
    %cst = arith.constant dense<0.000000e+00> : vector<8x128xf32>
    %3 = tpu.matmul %0, %2, %cst {dimension_numbers = #tpu.dot_dimension_numbers<[1], [0], [0], [1], [0, 0, 1, 1], [], []>} : vector<8x32xf32>, vector<32x128xf32>, vector<8x128xf32> -> vector<8x128xf32>
    %c0_4 = arith.constant 0 : index
    %c0_5 = arith.constant 0 : index
    %c0_6 = arith.constant 0 : index
    %4 = vector.load %arg8[%c0_4, %c0_5, %c0_6] : memref<1x3x128xf32, #tpu.memory_space<vmem>>, vector<1x1x128xf32>
    %5 = vector.shape_cast %4 : vector<1x1x128xf32> to vector<1x128xf32>
    %6 = vector.broadcast %5 : vector<1x128xf32> to vector<8x128xf32>
    %7 = arith.addf %3, %6 : vector<8x128xf32>
    %8 = math.tanh %7 : vector<8x128xf32>
    %c0_7 = arith.constant 0 : index
    %c0_8 = arith.constant 0 : index
    %c0_9 = arith.constant 0 : index
    %9 = vector.load %arg5[%c0_7, %c0_8, %c0_9] : memref<1x128x128xf32, #tpu.memory_space<vmem>>, vector<1x128x128xf32>
    %10 = vector.shape_cast %9 : vector<1x128x128xf32> to vector<128x128xf32>
    %cst_10 = arith.constant dense<0.000000e+00> : vector<8x128xf32>
    %11 = tpu.matmul %8, %10, %cst_10 {dimension_numbers = #tpu.dot_dimension_numbers<[1], [0], [0], [1], [0, 0, 1, 1], [], []>} : vector<8x128xf32>, vector<128x128xf32>, vector<8x128xf32> -> vector<8x128xf32>
    %c0_11 = arith.constant 0 : index
    %c1 = arith.constant 1 : index
    %c0_12 = arith.constant 0 : index
    %12 = vector.load %arg8[%c0_11, %c1, %c0_12] : memref<1x3x128xf32, #tpu.memory_space<vmem>>, vector<1x1x128xf32>
    %13 = vector.shape_cast %12 : vector<1x1x128xf32> to vector<1x128xf32>
    %14 = vector.broadcast %13 : vector<1x128xf32> to vector<8x128xf32>
    %15 = arith.addf %11, %14 : vector<8x128xf32>
    %16 = math.tanh %15 : vector<8x128xf32>
    %c0_13 = arith.constant 0 : index
    %c0_14 = arith.constant 0 : index
    %c0_15 = arith.constant 0 : index
    %17 = vector.load %arg6[%c0_13, %c0_14, %c0_15] : memref<1x128x128xf32, #tpu.memory_space<vmem>>, vector<1x128x128xf32>
    %18 = vector.shape_cast %17 : vector<1x128x128xf32> to vector<128x128xf32>
    %cst_16 = arith.constant dense<0.000000e+00> : vector<8x128xf32>
    %19 = tpu.matmul %16, %18, %cst_16 {dimension_numbers = #tpu.dot_dimension_numbers<[1], [0], [0], [1], [0, 0, 1, 1], [], []>} : vector<8x128xf32>, vector<128x128xf32>, vector<8x128xf32> -> vector<8x128xf32>
    %c0_17 = arith.constant 0 : index
    %c0_18 = arith.constant 0 : index
    %c0_19 = arith.constant 0 : index
    %20 = vector.load %arg7[%c0_17, %c0_18, %c0_19] : memref<1x32x128xf32, #tpu.memory_space<vmem>>, vector<1x32x128xf32>
    %21 = vector.shape_cast %20 : vector<1x32x128xf32> to vector<32x128xf32>
    %cst_20 = arith.constant dense<0.000000e+00> : vector<8x128xf32>
    %22 = tpu.matmul %0, %21, %cst_20 {dimension_numbers = #tpu.dot_dimension_numbers<[1], [0], [0], [1], [0, 0, 1, 1], [], []>} : vector<8x32xf32>, vector<32x128xf32>, vector<8x128xf32> -> vector<8x128xf32>
    %23 = arith.addf %19, %22 : vector<8x128xf32>
    %c0_21 = arith.constant 0 : index
    %c2 = arith.constant 2 : index
    %c0_22 = arith.constant 0 : index
    %24 = vector.load %arg8[%c0_21, %c2, %c0_22] : memref<1x3x128xf32, #tpu.memory_space<vmem>>, vector<1x1x128xf32>
    %25 = vector.shape_cast %24 : vector<1x1x128xf32> to vector<1x128xf32>
    %26 = vector.broadcast %25 : vector<1x128xf32> to vector<8x128xf32>
    %27 = arith.addf %23, %26 : vector<8x128xf32>
    %c0_23 = arith.constant 0 : index
    %c0_24 = arith.constant 0 : index
    %c0_25 = arith.constant 0 : index
    %28 = vector.load %arg9[%c0_23, %c0_24, %c0_25] : memref<1x8x128xf32, #tpu.memory_space<vmem>>, vector<1x8x128xf32>
    %29 = vector.shape_cast %28 : vector<1x8x128xf32> to vector<8x128xf32>
    %30 = vector.shape_cast %27 : vector<8x128xf32> to vector<1x8x128xf32>
    tpu.vector_store %arg9[%c0_23, %c0_24, %c0_25], %30 {strides = array<i32>} : memref<1x8x128xf32, #tpu.memory_space<vmem>>, vector<1x8x128xf32>,
    return
  }
  func.func @transform_0(%arg0: i32, %arg1: i32, %arg2: memref<1xi32, #tpu.memory_space<smem>>) -> (i32, i32) {
    %c0_i32 = arith.constant 0 : i32
    %c0_i32_0 = arith.constant 0 : i32
    return %arg1, %c0_i32 : i32, i32
  }
  func.func @transform_1(%arg0: i32, %arg1: i32, %arg2: memref<1xi32, #tpu.memory_space<smem>>) -> (i32, i32, i32) {
    %0 = arith.index_cast %arg0 : i32 to index
    %1 = memref.load %arg2[%0] : memref<1xi32, #tpu.memory_space<smem>>
    %c0_i32 = arith.constant 0 : i32
    %c0_i32_0 = arith.constant 0 : i32
    %c0_i32_1 = arith.constant 0 : i32
    return %1, %c0_i32, %c0_i32_0 : i32, i32, i32
  }
  func.func @transform_2(%arg0: i32, %arg1: i32, %arg2: memref<1xi32, #tpu.memory_space<smem>>) -> (i32, i32, i32) {
    %0 = arith.index_cast %arg0 : i32 to index
    %1 = memref.load %arg2[%0] : memref<1xi32, #tpu.memory_space<smem>>
    %c0_i32 = arith.constant 0 : i32
    %c0_i32_0 = arith.constant 0 : i32
    %c0_i32_1 = arith.constant 0 : i32
    return %1, %c0_i32, %c0_i32_0 : i32, i32, i32
  }
  func.func @transform_3(%arg0: i32, %arg1: i32, %arg2: memref<1xi32, #tpu.memory_space<smem>>) -> (i32, i32, i32) {
    %0 = arith.index_cast %arg0 : i32 to index
    %1 = memref.load %arg2[%0] : memref<1xi32, #tpu.memory_space<smem>>
    %c0_i32 = arith.constant 0 : i32
    %c0_i32_0 = arith.constant 0 : i32
    %c0_i32_1 = arith.constant 0 : i32
    return %1, %c0_i32, %c0_i32_0 : i32, i32, i32
  }
  func.func @transform_4(%arg0: i32, %arg1: i32, %arg2: memref<1xi32, #tpu.memory_space<smem>>) -> (i32, i32, i32) {
    %0 = arith.index_cast %arg0 : i32 to index
    %1 = memref.load %arg2[%0] : memref<1xi32, #tpu.memory_space<smem>>
    %c0_i32 = arith.constant 0 : i32
    %c0_i32_0 = arith.constant 0 : i32
    %c0_i32_1 = arith.constant 0 : i32
    return %1, %c0_i32, %c0_i32_0 : i32, i32, i32
  }
  func.func @transform_5(%arg0: i32, %arg1: i32, %arg2: memref<1xi32, #tpu.memory_space<smem>>) -> (i32, i32, i32) {
    %0 = arith.index_cast %arg0 : i32 to index
    %1 = memref.load %arg2[%0] : memref<1xi32, #tpu.memory_space<smem>>
    %c0_i32 = arith.constant 0 : i32
    %c0_i32_0 = arith.constant 0 : i32
    %c0_i32_1 = arith.constant 0 : i32
    return %1, %c0_i32, %c0_i32_0 : i32, i32, i32
  }
  func.func @transform_6(%arg0: i32, %arg1: i32, %arg2: memref<1xi32, #tpu.memory_space<smem>>) -> (i32, i32, i32) {
    %c0_i32 = arith.constant 0 : i32
    %c0_i32_0 = arith.constant 0 : i32
    return %arg0, %arg1, %c0_i32 : i32, i32, i32
  }
}

</mosaic_0001>

<llo_original>
// kernel: tpu_custom_call.1
$region0: #{tpu_custom_call.1}
  #allocation0 [shape = 'u32[]', space=smem, size = 0x4, offset = 0x4, fixed_abs, tag = 'smem constant byte address 0x4 - core index']
  #allocation1 [shape = 'u32[144,128]{1,0:T(1,128)}', space=vmem, size = 0x12000, scoped, tag = 'internal scratch']
  #allocation2 [shape = 's32[1]{0}', space=sflag, size = 0x4, scoped, tag = 'scoped memory for tpu_custom_call.1']
  #allocation3 [shape = 's32[1]{0:T(128)S(6)}', space=smem, size = 0x200, scoped, tag = 'prefetched SMEM operand 0']
  %s0 = inlined_call_operand.<no memory space> [shape: s32[1], index: 0, kind: input, shape index: {}]
  %s1 = inlined_call_operand.vmem [shape: f32[8,32], index: 1, kind: input, shape index: {}]
  %s2 = inlined_call_operand.hbm [shape: f32[2,32,128], index: 2, kind: input, shape index: {}]
  %s3 = inlined_call_operand.hbm [shape: f32[2,128,128], index: 3, kind: input, shape index: {}]
  %s4 = inlined_call_operand.hbm [shape: f32[2,128,128], index: 4, kind: input, shape index: {}]
  %s5 = inlined_call_operand.hbm [shape: f32[2,32,128], index: 5, kind: input, shape index: {}]
  %s6 = inlined_call_operand.vmem [shape: f32[2,3,128], index: 6, kind: input, shape index: {}]
  %s7 = inlined_call_operand.hbm [shape: f32[1,8,128], index: 7, kind: output, shape index: {}]
  %s8 = sld [smem:[#allocation0]]
  $region50: #{tpu_custom_call.1} parent=0
    _
  %s10 = ssub.s32 1, %s8
  %s11 = scalar_select 0, %s10, %s8
  %12 = sst [smem:[#allocation3]] %s0
  $region1: #{tpu_custom_call.1} parent=0
    #allocation4 [shape = 'u8[16384]{0}', space=vmem, size = 0x4000, scoped, tag = 'input window, operand 2, single buffered']
    #allocation5 [shape = 's32[1]{0}', space=sflag, size = 0x4, scoped, tag = 'scoped memory for tpu_custom_call.1']
    #allocation6 [shape = 's32[1]{0}', space=sflag, size = 0x4, scoped, tag = 'scoped memory for tpu_custom_call.1']
    #allocation7 [shape = 'u8[65536]{0}', space=vmem, size = 0x10000, scoped, tag = 'input window, operand 3, single buffered']
    #allocation8 [shape = 's32[1]{0}', space=sflag, size = 0x4, scoped, tag = 'scoped memory for tpu_custom_call.1']
    #allocation9 [shape = 'u8[65536]{0}', space=vmem, size = 0x10000, scoped, tag = 'input window, operand 4, single buffered']
    #allocation10 [shape = 'u8[16384]{0}', space=vmem, size = 0x4000, scoped, tag = 'input window, operand 5, single buffered']
    #allocation11 [shape = 's32[1]{0}', space=sflag, size = 0x4, scoped, tag = 'scoped memory for tpu_custom_call.1']
    #allocation12 [shape = 'u8[4096]{0}', space=vmem, size = 0x1000, scoped, tag = 'output window, operand 0, single buffered']
    %13 = vsyncpa [#allocation5], 0
    %14 = vsyncpa [#allocation8], 0
    %15 = vsyncpa [#allocation11], 0
    %16 = vsyncpa [#allocation6], 0
    // Predicated region
    $region2: #{tpu_custom_call.1} parent=1 // pred_check
      _
    $region3: #{tpu_custom_call.1} parent=1 // pred_check_branch
      %18 = sbr.rel (0) target = $region5
    $region4: #{tpu_custom_call.1} parent=1 // pred_region
      _
    $region5: #{tpu_custom_call.1} parent=1 // pred_fallthru
      _
    // Predicated region
    $region6: #{tpu_custom_call.1} parent=1 // pred_check
      _
    $region7: #{tpu_custom_call.1} parent=1 // pred_check_branch
      %20 = sbr.rel (0) target = $region9
    $region8: #{tpu_custom_call.1} parent=1 // pred_region
      %s21 = sld [smem:[#allocation3]]
      %s23 = ssub.s32 512, 512
      %24 = vsyncadd [#allocation5], %s23
      %s25 = smul.addr %s21, 4
      %s26 = smul.addr %s25, 128
      %s27 = scalar_lea.hbm %s2, %s26
      %s28 = sshll.u32 [#allocation4], 4
      %s29 = int_to_ptr.vmem [resolvable:$true] %s28
      %34 = dma.hbm_to_vmem [thread:$0]  %s27, 512, %s29, [#allocation5], 128, 128, 8
    $region9: #{tpu_custom_call.1} parent=1 // pred_fallthru
      _
    // Predicated region
    $region10: #{tpu_custom_call.1} parent=1 // pred_check
      _
    $region11: #{tpu_custom_call.1} parent=1 // pred_check_branch
      %36 = sbr.rel (0) target = $region13
    $region12: #{tpu_custom_call.1} parent=1 // pred_region
      %s37 = sld [smem:[#allocation3]]
      %s39 = ssub.s32 2048, 2048
      %40 = vsyncadd [#allocation8], %s39
      %s41 = smul.addr %s37, 16
      %s42 = smul.addr %s41, 128
      %s43 = scalar_lea.hbm %s3, %s42
      %s44 = sshll.u32 [#allocation7], 4
      %s45 = int_to_ptr.vmem [resolvable:$true] %s44
      %50 = dma.hbm_to_vmem [thread:$0]  %s43, 2048, %s45, [#allocation8], 128, 128, 8
    $region13: #{tpu_custom_call.1} parent=1 // pred_fallthru
      _
    // Predicated region
    $region14: #{tpu_custom_call.1} parent=1 // pred_check
      _
    $region15: #{tpu_custom_call.1} parent=1 // pred_check_branch
      %52 = sbr.rel (0) target = $region17
    $region16: #{tpu_custom_call.1} parent=1 // pred_region
      %s53 = sld [smem:[#allocation3]]
      %s55 = ssub.s32 2048, 2048
      %56 = vsyncadd [#allocation8], %s55
      %s57 = smul.addr %s53, 16
      %s58 = smul.addr %s57, 128
      %s59 = scalar_lea.hbm %s4, %s58
      %s60 = sshll.u32 [#allocation9], 4
      %s61 = int_to_ptr.vmem [resolvable:$true] %s60
      %66 = dma.hbm_to_vmem [thread:$0]  %s59, 2048, %s61, [#allocation8], 128, 128, 8
    $region17: #{tpu_custom_call.1} parent=1 // pred_fallthru
      _
    // Predicated region
    $region18: #{tpu_custom_call.1} parent=1 // pred_check
      _
    $region19: #{tpu_custom_call.1} parent=1 // pred_check_branch
      %68 = sbr.rel (0) target = $region21
    $region20: #{tpu_custom_call.1} parent=1 // pred_region
      %s69 = sld [smem:[#allocation3]]
      %s71 = ssub.s32 512, 512
      %72 = vsyncadd [#allocation11], %s71
      %s73 = smul.addr %s69, 4
      %s74 = smul.addr %s73, 128
      %s75 = scalar_lea.hbm %s5, %s74
      %s76 = sshll.u32 [#allocation10], 4
      %s77 = int_to_ptr.vmem [resolvable:$true] %s76
      %82 = dma.hbm_to_vmem [thread:$0]  %s75, 512, %s77, [#allocation11], 128, 128, 8
    $region21: #{tpu_custom_call.1} parent=1 // pred_fallthru
      _
    // Predicated region
    $region22: #{tpu_custom_call.1} parent=1 // pred_check
      _
    $region23: #{tpu_custom_call.1} parent=1 // pred_check_branch
      %84 = sbr.rel (0) target = $region25
    $region24: #{tpu_custom_call.1} parent=1 // pred_region
      %s85 = sld [smem:[#allocation3]]
      %p86 = scmp.lt.s32.totalorder %s85, 1
      %s87 = scalar_select %p86, %s85, 1
      %s88 = smul.addr %s87, 4
      %s89 = scalar_lea.vmem %s6, %s88
      %s90 = sld [smem:[#allocation3]]
    $region25: #{tpu_custom_call.1} parent=1 // pred_fallthru
      _
    // Predicated region
    $region26: #{tpu_custom_call.1} parent=1 // pred_check
      _
    $region27: #{tpu_custom_call.1} parent=1 // pred_check_branch
      %92 = sbr.rel (0) target = $region29
    $region28: #{tpu_custom_call.1} parent=1 // pred_region
      %93 = dma.done [#allocation5], 512
    $region29: #{tpu_custom_call.1} parent=1 // pred_fallthru
      _
    // Predicated region
    $region30: #{tpu_custom_call.1} parent=1 // pred_check
      _
    $region31: #{tpu_custom_call.1} parent=1 // pred_check_branch
      %95 = sbr.rel (0) target = $region33
    $region32: #{tpu_custom_call.1} parent=1 // pred_region
      %96 = dma.done [#allocation8], 2048
    $region33: #{tpu_custom_call.1} parent=1 // pred_fallthru
      _
    // Predicated region
    $region34: #{tpu_custom_call.1} parent=1 // pred_check
      _
    $region35: #{tpu_custom_call.1} parent=1 // pred_check_branch
      %98 = sbr.rel (0) target = $region37
    $region36: #{tpu_custom_call.1} parent=1 // pred_region
      %99 = dma.done [#allocation8], 2048
    $region37: #{tpu_custom_call.1} parent=1 // pred_fallthru
      _
    // Predicated region
    $region38: #{tpu_custom_call.1} parent=1 // pred_check
      _
    $region39: #{tpu_custom_call.1} parent=1 // pred_check_branch
      %101 = sbr.rel (0) target = $region41
    $region40: #{tpu_custom_call.1} parent=1 // pred_region
      %102 = dma.done [#allocation11], 512
    $region41: #{tpu_custom_call.1} parent=1 // pred_fallthru
      _
    %s103 = sld [smem:[#allocation3]]
    %p104 = scmp.lt.s32.totalorder %s103, 1
    %s105 = scalar_select %p104, %s103, 1
    %s106 = smul.addr %s105, 4
    %s107 = scalar_lea.vmem %s6, %s106
    %s108 = sld [smem:[#allocation3]]
    %s109 = sld [smem:[#allocation3]]
    %s110 = sld [smem:[#allocation3]]
    %s111 = sld [smem:[#allocation3]]
    %s112 = sld [smem:[#allocation3]]
    %p113 = scmp.lt.s32.totalorder %s112, 1
    %s114 = scalar_select %p113, %s112, 1
    %s115 = smul.addr %s114, 4
    %s116 = scalar_lea.vmem %s6, %s115
    %s117 = sld [smem:[#allocation3]]
    %v118 = vld [vmem:[%s1] sm:$0xff]
    %v119 = vld [vmem:[#allocation4] sm:$0xff]
    %v120 = vld [vmem:[#allocation4 + $0x8] sm:$0xff]
    %v121 = vld [vmem:[#allocation4 + $0x10] sm:$0xff]
    %v122 = vld [vmem:[#allocation4 + $0x18] sm:$0xff]
    %v123 = vld [vmem:[%s116] sm:$0x1]
    %v124 = vlaneseq
    %v125 = vshrl.u32 %v124, 7
    %v126 = vsub.s32 0, %v125
    %v127 = vrot.slane %v123, %v126
    %vm128 = vcmask 261120
    %v130 = vsel %vm128, %v118, 0
    %132 = vmatprep.subr.mxu0 0.0
    %133 = vmatpush1.msra.mxu0 0.0
    %134 = vmatprep.subr.mxu0 0.0
    %135 = vmatpush1.msra.mxu0 0.0
    %136 = vmatprep.subr.mxu0 0.0
    %137 = vmatpush1.msra.mxu0 0.0
    %138 = vmatprep.subr.mxu0 0.0
    %139 = vmatpush1.msra.mxu0 0.0
    %140 = vmatprep.subr.mxu0 0.0
    %141 = vmatpush1.msra.mxu0 0.0
    %142 = vmatprep.subr.mxu0 0.0
    %143 = vmatpush1.msra.mxu0 0.0
    %144 = vmatprep.subr.mxu0 0.0
    %145 = vmatpush1.msra.mxu0 0.0
    %146 = vmatprep.subr.mxu0 0.0
    %147 = vmatpush1.msra.mxu0 0.0
    %148 = vmatprep.subr.mxu0 0.0
    %149 = vmatpush1.msra.mxu0 0.0
    %150 = vmatprep.subr.mxu0 0.0
    %151 = vmatpush1.msra.mxu0 0.0
    %152 = vmatprep.subr.mxu0 0.0
    %153 = vmatpush1.msra.mxu0 0.0
    %154 = vmatprep.subr.mxu0 0.0
    %155 = vmatpush1.msra.mxu0 0.0
    %156 = vmatprep.subr.mxu0 0.0
    %157 = vmatpush1.msra.mxu0 %v122
    %158 = vmatprep.subr.mxu0 0.0
    %159 = vmatpush1.msra.mxu0 %v121
    %160 = vmatprep.subr.mxu0 0.0
    %161 = vmatpush1.msra.mxu0 %v120
    %162 = vmatprep.subr.mxu0 0.0
    %163 = vmatpush1.msra.mxu0 %v119
    %164 = vmatprep.subr.mxu0 0.0
    %165 = vmatpush2.msra.mxu0 0.0
    %166 = vmatprep.subr.mxu0 0.0
    %167 = vmatpush2.msra.mxu0 0.0
    %168 = vmatprep.subr.mxu0 0.0
    %169 = vmatpush2.msra.mxu0 0.0
    %170 = vmatprep.subr.mxu0 0.0
    %171 = vmatpush2.msra.mxu0 0.0
    %172 = vmatprep.subr.mxu0 0.0
    %173 = vmatpush2.msra.mxu0 0.0
    %174 = vmatprep.subr.mxu0 0.0
    %175 = vmatpush2.msra.mxu0 0.0
    %176 = vmatprep.subr.mxu0 0.0
    %177 = vmatpush2.msra.mxu0 0.0
    %178 = vmatprep.subr.mxu0 0.0
    %179 = vmatpush2.msra.mxu0 0.0
    %180 = vmatprep.subr.mxu0 0.0
    %181 = vmatpush2.msra.mxu0 0.0
    %182 = vmatprep.subr.mxu0 0.0
    %183 = vmatpush2.msra.mxu0 0.0
    %184 = vmatprep.subr.mxu0 0.0
    %185 = vmatpush2.msra.mxu0 0.0
    %186 = vmatprep.subr.mxu0 0.0
    %187 = vmatpush2.msra.mxu0 0.0
    %188 = vmatprep.subr.mxu0 0.0
    %189 = vmatpush2.msra.mxu0 0.0
    %190 = vmatprep.subr.mxu0 0.0
    %191 = vmatpush2.msra.mxu0 0.0
    %192 = vmatprep.subr.mxu0 0.0
    %193 = vmatpush2.msra.mxu0 0.0
    %194 = vmatprep.subr.mxu0 0.0
    %195 = vmatpush2.msra.mxu0 0.0
    %196 = vmatprep.mubr.f32.mxu0 0.0
    %197 = vmatmul.mubr.f32.gmra.mxu0 %v130
    %v198 = vpop.f32.mrf.mxu0
    %v199 = vadd.f32 %v127, %v198
    %v200 = vpop.f32.mrf.mxu0
    %201 = vdwg.mxu0
    %v202 = vtanh.pop %v199
    %v203 = vld [vmem:[#allocation7] sm:$0xff]
    %v204 = vld [vmem:[#allocation7 + $0x8] sm:$0xff]
    %v205 = vld [vmem:[#allocation7 + $0x10] sm:$0xff]
    %v206 = vld [vmem:[#allocation7 + $0x18] sm:$0xff]
    %v207 = vld [vmem:[#allocation7 + $0x20] sm:$0xff]
    %v208 = vld [vmem:[#allocation7 + $0x28] sm:$0xff]
    %v209 = vld [vmem:[#allocation7 + $0x30] sm:$0xff]
    %v210 = vld [vmem:[#allocation7 + $0x38] sm:$0xff]
    %v211 = vld [vmem:[#allocation7 + $0x40] sm:$0xff]
    %v212 = vld [vmem:[#allocation7 + $0x48] sm:$0xff]
    %v213 = vld [vmem:[#allocation7 + $0x50] sm:$0xff]
    %v214 = vld [vmem:[#allocation7 + $0x58] sm:$0xff]
    %v215 = vld [vmem:[#allocation7 + $0x60] sm:$0xff]
    %v216 = vld [vmem:[#allocation7 + $0x68] sm:$0xff]
    %v217 = vld [vmem:[#allocation7 + $0x70] sm:$0xff]
    %v218 = vld [vmem:[#allocation7 + $0x78] sm:$0xff]
    %v219 = vld [vmem:[%s116 + $0x1] sm:$0x1]
    %v220 = vlaneseq
    %v221 = vshrl.u32 %v220, 7
    %v222 = vsub.s32 0, %v221
    %v223 = vrot.slane %v219, %v222
    %224 = vmatprep.subr.mxu0 0.0
    %225 = vmatpush1.msra.mxu0 %v218
    %226 = vmatprep.subr.mxu0 0.0
    %227 = vmatpush1.msra.mxu0 %v217
    %228 = vmatprep.subr.mxu0 0.0
    %229 = vmatpush1.msra.mxu0 %v216
    %230 = vmatprep.subr.mxu0 0.0
    %231 = vmatpush1.msra.mxu0 %v215
    %232 = vmatprep.subr.mxu0 0.0
    %233 = vmatpush1.msra.mxu0 %v214
    %234 = vmatprep.subr.mxu0 0.0
    %235 = vmatpush1.msra.mxu0 %v213
    %236 = vmatprep.subr.mxu0 0.0
    %237 = vmatpush1.msra.mxu0 %v212
    %238 = vmatprep.subr.mxu0 0.0
    %239 = vmatpush1.msra.mxu0 %v211
    %240 = vmatprep.subr.mxu0 0.0
    %241 = vmatpush1.msra.mxu0 %v210
    %242 = vmatprep.subr.mxu0 0.0
    %243 = vmatpush1.msra.mxu0 %v209
    %244 = vmatprep.subr.mxu0 0.0
    %245 = vmatpush1.msra.mxu0 %v208
    %246 = vmatprep.subr.mxu0 0.0
    %247 = vmatpush1.msra.mxu0 %v207
    %248 = vmatprep.subr.mxu0 0.0
    %249 = vmatpush1.msra.mxu0 %v206
    %250 = vmatprep.subr.mxu0 0.0
    %251 = vmatpush1.msra.mxu0 %v205
    %252 = vmatprep.subr.mxu0 0.0
    %253 = vmatpush1.msra.mxu0 %v204
    %254 = vmatprep.subr.mxu0 0.0
    %255 = vmatpush1.msra.mxu0 %v203
    %256 = vmatprep.subr.mxu0 0.0
    %257 = vmatpush2.msra.mxu0 0.0
    %258 = vmatprep.subr.mxu0 0.0
    %259 = vmatpush2.msra.mxu0 0.0
    %260 = vmatprep.subr.mxu0 0.0
    %261 = vmatpush2.msra.mxu0 0.0
    %262 = vmatprep.subr.mxu0 0.0
    %263 = vmatpush2.msra.mxu0 0.0
    %264 = vmatprep.subr.mxu0 0.0
    %265 = vmatpush2.msra.mxu0 0.0
    %266 = vmatprep.subr.mxu0 0.0
    %267 = vmatpush2.msra.mxu0 0.0
    %268 = vmatprep.subr.mxu0 0.0
    %269 = vmatpush2.msra.mxu0 0.0
    %270 = vmatprep.subr.mxu0 0.0
    %271 = vmatpush2.msra.mxu0 0.0
    %272 = vmatprep.subr.mxu0 0.0
    %273 = vmatpush2.msra.mxu0 0.0
    %274 = vmatprep.subr.mxu0 0.0
    %275 = vmatpush2.msra.mxu0 0.0
    %276 = vmatprep.subr.mxu0 0.0
    %277 = vmatpush2.msra.mxu0 0.0
    %278 = vmatprep.subr.mxu0 0.0
    %279 = vmatpush2.msra.mxu0 0.0
    %280 = vmatprep.subr.mxu0 0.0
    %281 = vmatpush2.msra.mxu0 0.0
    %282 = vmatprep.subr.mxu0 0.0
    %283 = vmatpush2.msra.mxu0 0.0
    %284 = vmatprep.subr.mxu0 0.0
    %285 = vmatpush2.msra.mxu0 0.0
    %286 = vmatprep.subr.mxu0 0.0
    %287 = vmatpush2.msra.mxu0 0.0
    %288 = vmatprep.mubr.f32.mxu0 0.0
    %289 = vmatmul.mubr.f32.gmra.mxu0 %v202
    %v290 = vpop.f32.mrf.mxu0
    %v291 = vadd.f32 %v223, %v290
    %v292 = vpop.f32.mrf.mxu0
    %293 = vdwg.mxu0
    %v294 = vtanh.pop %v291
    %v295 = vld [vmem:[#allocation9] sm:$0xff]
    %v296 = vld [vmem:[#allocation9 + $0x8] sm:$0xff]
    %v297 = vld [vmem:[#allocation9 + $0x10] sm:$0xff]
    %v298 = vld [vmem:[#allocation9 + $0x18] sm:$0xff]
    %v299 = vld [vmem:[#allocation9 + $0x20] sm:$0xff]
    %v300 = vld [vmem:[#allocation9 + $0x28] sm:$0xff]
    %v301 = vld [vmem:[#allocation9 + $0x30] sm:$0xff]
    %v302 = vld [vmem:[#allocation9 + $0x38] sm:$0xff]
    %v303 = vld [vmem:[#allocation9 + $0x40] sm:$0xff]
    %v304 = vld [vmem:[#allocation9 + $0x48] sm:$0xff]
    %v305 = vld [vmem:[#allocation9 + $0x50] sm:$0xff]
    %v306 = vld [vmem:[#allocation9 + $0x58] sm:$0xff]
    %v307 = vld [vmem:[#allocation9 + $0x60] sm:$0xff]
    %v308 = vld [vmem:[#allocation9 + $0x68] sm:$0xff]
    %v309 = vld [vmem:[#allocation9 + $0x70] sm:$0xff]
    %v310 = vld [vmem:[#allocation9 + $0x78] sm:$0xff]
    %v311 = vld [vmem:[#allocation10] sm:$0xff]
    %v312 = vld [vmem:[#allocation10 + $0x8] sm:$0xff]
    %v313 = vld [vmem:[#allocation10 + $0x10] sm:$0xff]
    %v314 = vld [vmem:[#allocation10 + $0x18] sm:$0xff]
    %315 = vmatprep.subr.mxu0 0.0
    %316 = vmatpush1.msra.mxu0 0.0
    %317 = vmatprep.subr.mxu0 0.0
    %318 = vmatpush1.msra.mxu0 0.0
    %319 = vmatprep.subr.mxu0 0.0
    %320 = vmatpush1.msra.mxu0 0.0
    %321 = vmatprep.subr.mxu0 0.0
    %322 = vmatpush1.msra.mxu0 0.0
    %323 = vmatprep.subr.mxu0 0.0
    %324 = vmatpush1.msra.mxu0 0.0
    %325 = vmatprep.subr.mxu0 0.0
    %326 = vmatpush1.msra.mxu0 0.0
    %327 = vmatprep.subr.mxu0 0.0
    %328 = vmatpush1.msra.mxu0 0.0
    %329 = vmatprep.subr.mxu0 0.0
    %330 = vmatpush1.msra.mxu0 0.0
    %331 = vmatprep.subr.mxu0 0.0
    %332 = vmatpush1.msra.mxu0 0.0
    %333 = vmatprep.subr.mxu0 0.0
    %334 = vmatpush1.msra.mxu0 0.0
    %335 = vmatprep.subr.mxu0 0.0
    %336 = vmatpush1.msra.mxu0 0.0
    %337 = vmatprep.subr.mxu0 0.0
    %338 = vmatpush1.msra.mxu0 0.0
    %339 = vmatprep.subr.mxu0 0.0
    %340 = vmatpush1.msra.mxu0 %v314
    %341 = vmatprep.subr.mxu0 0.0
    %342 = vmatpush1.msra.mxu0 %v313
    %343 = vmatprep.subr.mxu0 0.0
    %344 = vmatpush1.msra.mxu0 %v312
    %345 = vmatprep.subr.mxu0 0.0
    %346 = vmatpush1.msra.mxu0 %v311
    %347 = vmatprep.subr.mxu0 0.0
    %348 = vmatpush2.msra.mxu0 0.0
    %349 = vmatprep.subr.mxu0 0.0
    %350 = vmatpush2.msra.mxu0 0.0
    %351 = vmatprep.subr.mxu0 0.0
    %352 = vmatpush2.msra.mxu0 0.0
    %353 = vmatprep.subr.mxu0 0.0
    %354 = vmatpush2.msra.mxu0 0.0
    %355 = vmatprep.subr.mxu0 0.0
    %356 = vmatpush2.msra.mxu0 0.0
    %357 = vmatprep.subr.mxu0 0.0
    %358 = vmatpush2.msra.mxu0 0.0
    %359 = vmatprep.subr.mxu0 0.0
    %360 = vmatpush2.msra.mxu0 0.0
    %361 = vmatprep.subr.mxu0 0.0
    %362 = vmatpush2.msra.mxu0 0.0
    %363 = vmatprep.subr.mxu0 0.0
    %364 = vmatpush2.msra.mxu0 0.0
    %365 = vmatprep.subr.mxu0 0.0
    %366 = vmatpush2.msra.mxu0 0.0
    %367 = vmatprep.subr.mxu0 0.0
    %368 = vmatpush2.msra.mxu0 0.0
    %369 = vmatprep.subr.mxu0 0.0
    %370 = vmatpush2.msra.mxu0 0.0
    %371 = vmatprep.subr.mxu0 0.0
    %372 = vmatpush2.msra.mxu0 0.0
    %373 = vmatprep.subr.mxu0 0.0
    %374 = vmatpush2.msra.mxu0 0.0
    %375 = vmatprep.subr.mxu0 0.0
    %376 = vmatpush2.msra.mxu0 0.0
    %377 = vmatprep.subr.mxu0 0.0
    %378 = vmatpush2.msra.mxu0 0.0
    %379 = vmatprep.mubr.f32.mxu0 0.0
    %380 = vmatmul.mubr.f32.gmra.mxu0 %v130
    %v381 = vpop.f32.mrf.mxu0
    %v382 = vadd.f32 0.0, %v381
    %v383 = vpop.f32.mrf.mxu0
    %384 = vdwg.mxu0
    %385 = vmatprep.subr.mxu0 0.0
    %386 = vmatpush1.msra.mxu0 %v310
    %387 = vmatprep.subr.mxu0 0.0
    %388 = vmatpush1.msra.mxu0 %v309
    %389 = vmatprep.subr.mxu0 0.0
    %390 = vmatpush1.msra.mxu0 %v308
    %391 = vmatprep.subr.mxu0 0.0
    %392 = vmatpush1.msra.mxu0 %v307
    %393 = vmatprep.subr.mxu0 0.0
    %394 = vmatpush1.msra.mxu0 %v306
    %395 = vmatprep.subr.mxu0 0.0
    %396 = vmatpush1.msra.mxu0 %v305
    %397 = vmatprep.subr.mxu0 0.0
    %398 = vmatpush1.msra.mxu0 %v304
    %399 = vmatprep.subr.mxu0 0.0
    %400 = vmatpush1.msra.mxu0 %v303
    %401 = vmatprep.subr.mxu0 0.0
    %402 = vmatpush1.msra.mxu0 %v302
    %403 = vmatprep.subr.mxu0 0.0
    %404 = vmatpush1.msra.mxu0 %v301
    %405 = vmatprep.subr.mxu0 0.0
    %406 = vmatpush1.msra.mxu0 %v300
    %407 = vmatprep.subr.mxu0 0.0
    %408 = vmatpush1.msra.mxu0 %v299
    %409 = vmatprep.subr.mxu0 0.0
    %410 = vmatpush1.msra.mxu0 %v298
    %411 = vmatprep.subr.mxu0 0.0
    %412 = vmatpush1.msra.mxu0 %v297
    %413 = vmatprep.subr.mxu0 0.0
    %414 = vmatpush1.msra.mxu0 %v296
    %415 = vmatprep.subr.mxu0 0.0
    %416 = vmatpush1.msra.mxu0 %v295
    %417 = vmatprep.subr.mxu0 0.0
    %418 = vmatpush2.msra.mxu0 0.0
    %419 = vmatprep.subr.mxu0 0.0
    %420 = vmatpush2.msra.mxu0 0.0
    %421 = vmatprep.subr.mxu0 0.0
    %422 = vmatpush2.msra.mxu0 0.0
    %423 = vmatprep.subr.mxu0 0.0
    %424 = vmatpush2.msra.mxu0 0.0
    %425 = vmatprep.subr.mxu0 0.0
    %426 = vmatpush2.msra.mxu0 0.0
    %427 = vmatprep.subr.mxu0 0.0
    %428 = vmatpush2.msra.mxu0 0.0
    %429 = vmatprep.subr.mxu0 0.0
    %430 = vmatpush2.msra.mxu0 0.0
    %431 = vmatprep.subr.mxu0 0.0
    %432 = vmatpush2.msra.mxu0 0.0
    %433 = vmatprep.subr.mxu0 0.0
    %434 = vmatpush2.msra.mxu0 0.0
    %435 = vmatprep.subr.mxu0 0.0
    %436 = vmatpush2.msra.mxu0 0.0
    %437 = vmatprep.subr.mxu0 0.0
    %438 = vmatpush2.msra.mxu0 0.0
    %439 = vmatprep.subr.mxu0 0.0
    %440 = vmatpush2.msra.mxu0 0.0
    %441 = vmatprep.subr.mxu0 0.0
    %442 = vmatpush2.msra.mxu0 0.0
    %443 = vmatprep.subr.mxu0 0.0
    %444 = vmatpush2.msra.mxu0 0.0
    %445 = vmatprep.subr.mxu0 0.0
    %446 = vmatpush2.msra.mxu0 0.0
    %447 = vmatprep.subr.mxu0 0.0
    %448 = vmatpush2.msra.mxu0 0.0
    %449 = vmatprep.mubr.f32.mxu0 0.0
    %450 = vmatmul.mubr.f32.gmra.mxu0 %v294
    %v451 = vpop.f32.mrf.mxu0
    %v452 = vadd.f32 %v382, %v451
    %v453 = vpop.f32.mrf.mxu0
    %454 = vdwg.mxu0
    %v455 = vld [vmem:[%s116 + $0x2] sm:$0x1]
    %v456 = vlaneseq
    %v457 = vshrl.u32 %v456, 7
    %v458 = vsub.s32 0, %v457
    %v459 = vrot.slane %v455, %v458
    %v460 = vadd.f32 %v452, %v459
    %461 = vst [vmem:[#allocation12] sm:$0xff] %v460
    // Predicated region
    $region42: #{tpu_custom_call.1} parent=1 // pred_check
      _
    $region43: #{tpu_custom_call.1} parent=1 // pred_check_branch
      %463 = sbr.rel (0) target = $region45
    $region44: #{tpu_custom_call.1} parent=1 // pred_region
      %s465 = ssub.s32 128, 128
      %466 = vsyncadd [#allocation6], %s465
      %s468 = sshll.u32 [#allocation12], 4
      %s469 = int_to_ptr.vmem [resolvable:$true] %s468
      %471 = dma.vmem_to_hbm [thread:$0]  %s469, 128, %s7, [#allocation6]
    $region45: #{tpu_custom_call.1} parent=1 // pred_fallthru
      _
    // Predicated region
    $region46: #{tpu_custom_call.1} parent=1 // pred_check
      _
    $region47: #{tpu_custom_call.1} parent=1 // pred_check_branch
      %473 = sbr.rel (0) target = $region49
    $region48: #{tpu_custom_call.1} parent=1 // pred_region
      %474 = dma.done [#allocation6], 128
    $region49: #{tpu_custom_call.1} parent=1 // pred_fallthru
      _
    %475 = vsyncpa [#allocation5], 1
    %476 = vsyncpa [#allocation8], 1
    %477 = vsyncpa [#allocation11], 1
    %478 = vsyncpa [#allocation6], 1

</llo_original>
